<compile_context>
chip_gen: v6e
topology: v6e:2x2x1
jax: 0.10.0
libtpu: 0.0.40
codegen_flags: <defaults>
</compile_context>

<pallas_src>
import jax
import jax.numpy as jnp
from jax.experimental import pallas as pl
from jax.experimental.pallas import tpu as pltpu


def _scale_kernel(scale_ref, x_ref, o_ref):
    # scale_ref: (1,) f32 in SMEM; x_ref/o_ref: (block_rows, lanes) in VMEM.
    s = scale_ref[0]
    x = x_ref[...]
    if jnp.issubdtype(x_ref.dtype, jnp.floating):
        # Native-dtype multiply: keeps bf16/f16 vregs packed (half the VALU work).
        o_ref[...] = (x * s.astype(x_ref.dtype)).astype(o_ref.dtype)
    else:
        # Integer (or bool) inputs promote to float32, like PyTorch x * float.
        o_ref[...] = (x.astype(jnp.float32) * s).astype(o_ref.dtype)


def _scale_2d(x2d: jax.Array, scale_arr: jax.Array, out_dtype, block_rows: int):
    """Run the scale kernel over a (rows, lanes) slab with row-blocked grid."""
    rows, lanes = x2d.shape
    steps = pl.cdiv(rows, block_rows)          # trailing partial block is masked
    n = rows * lanes
    in_item = jnp.dtype(x2d.dtype).itemsize
    out_item = jnp.dtype(out_dtype).itemsize

    # in+out block, double-buffered, plus headroom; capped well under every
    # generation's physical VMEM (v5e/v6e 128 MiB, v7x 64 MiB per TC).
    block_bytes = block_rows * lanes * (in_item + out_item)
    vmem_limit = int(min(2 * block_bytes + (8 << 20), 32 << 20))

    return pl.pallas_call(
        _scale_kernel,
        out_shape=jax.ShapeDtypeStruct((rows, lanes), out_dtype),
        grid_spec=pltpu.PrefetchScalarGridSpec(
            num_scalar_prefetch=0,
            grid=(steps,),
            in_specs=[
                pl.BlockSpec(memory_space=pltpu.MemorySpace.SMEM),    # scale scalar
                pl.BlockSpec((block_rows, lanes), lambda i: (i, 0)),  # x tile
            ],
            out_specs=pl.BlockSpec((block_rows, lanes), lambda i: (i, 0)),
        ),
        compiler_params=pltpu.CompilerParams(
            dimension_semantics=("parallel",),   # shards steps across v7x's 2 TCs
            vmem_limit_bytes=vmem_limit,
        ),
        cost_estimate=pl.CostEstimate(
            flops=n, transcendentals=0, bytes_accessed=n * (in_item + out_item)),
    )(scale_arr, x2d)


def scale_forward(x: jax.Array, scale) -> jax.Array:
    """Elementwise x * scale computed in Pallas TPU kernels."""
    orig_shape = x.shape
    in_dtype = x.dtype
    out_dtype = in_dtype if jnp.issubdtype(in_dtype, jnp.floating) else jnp.float32

    n = x.size
    if n == 0:
        return jnp.zeros(orig_shape, out_dtype)

    scale_arr = jnp.asarray([scale], dtype=jnp.float32)
    x_flat = x.reshape(-1)

    rem = n % 128                    # sub-128-lane tail (rare, ragged shapes only)
    main_n = n - rem

    pieces = []
    if main_n:
        # Lane width: prefer 512 (long contiguous rows, divides most shapes);
        # any multiple of 128 already gives unmasked vld/vst.
        lanes = 128
        for cand in (512, 256, 128):
            if main_n % cand == 0:
                lanes = cand
                break
        rows = main_n // lanes

        in_item = jnp.dtype(in_dtype).itemsize
        out_item = jnp.dtype(out_dtype).itemsize
        max_item = max(in_item, out_item)
        slab_bytes = rows * lanes * max_item

        small_slab_bytes = 1 << 20     # below this a 2-way split buys nothing
        target_block_bytes = 4 << 20   # ~4 MiB blocks; safe on v5e/v6e/v7x with
                                       # the vmem_limit_bytes raised above

        if slab_bytes <= small_slab_bytes:
            # Tiny slab: single grid step, block == full slab dims.
            block_rows = rows
        else:
            row_tile = 32              # covers f32(8)/bf16(16)/int8(32) sublane packing
            target_rows = max(row_tile, target_block_bytes // (lanes * max_item))
            steps = max(2, pl.cdiv(rows, target_rows))
            steps += steps % 2         # even step count -> balanced across 2 TCs (v7x)
            block_rows = pl.cdiv(rows, steps)
            block_rows = ((block_rows + row_tile - 1) // row_tile) * row_tile
            block_rows = min(block_rows, rows)

        main_out = _scale_2d(x_flat[:main_n].reshape(rows, lanes),
                             scale_arr, out_dtype, block_rows)
        pieces.append(main_out.reshape(-1))

    if rem:
        # Sub-128-element tail: one tiny full-block call (block == array dims),
        # instead of padding + slicing the whole flattened array.
        tail_out = _scale_2d(x_flat[main_n:].reshape(1, rem),
                             scale_arr, out_dtype, block_rows=1)
        pieces.append(tail_out.reshape(-1))

    out_flat = pieces[0] if len(pieces) == 1 else jnp.concatenate(pieces)
    return out_flat.reshape(orig_shape)


if __name__ == "__main__":
    # Scale(1/255) applied to NCHW image observations (ppo_relational.py).
    key = jax.random.PRNGKey(0)
    x = jax.random.normal(key, (2, 4, 16, 16), dtype=jnp.float32)
    scale = 1.0 / 255.0

    y = jax.block_until_ready(scale_forward(x, scale))
    ref = x * scale
    assert y.shape == x.shape and y.dtype == ref.dtype
    assert jnp.allclose(y, ref, atol=1e-6, rtol=1e-6)

    # Quiet extra checks: ragged tail path and multi-step tiled path.
    x2 = jax.random.normal(jax.random.PRNGKey(1), (3, 5, 7), dtype=jnp.float32)
    y2 = jax.block_until_ready(scale_forward(x2, scale))
    assert jnp.allclose(y2, x2 * scale, atol=1e-6, rtol=1e-6)

    x3 = jax.random.normal(jax.random.PRNGKey(2), (33, 4, 64, 64), dtype=jnp.float32)
    y3 = jax.block_until_ready(scale_forward(x3, scale))
    assert jnp.allclose(y3, x3 * scale, atol=1e-6, rtol=1e-6)

    print("KERNEL_OK")
</pallas_src>

<mosaic_0001>
module attributes {stable_mosaic.version = 11 : i64} {
  func.func @_scale_kernel(%arg0: i32, %arg1: memref<1xf32, #tpu.memory_space<smem>>, %arg2: memref<4x512xf32, #tpu.memory_space<vmem>>, %arg3: memref<4x512xf32, #tpu.memory_space<vmem>>) attributes {dimension_semantics = [#tpu.dimension_semantics<parallel>], iteration_bounds = array<i64: 1>, scalar_prefetch = 0 : i64, scratch_operands = 0 : i64, tpu.core_type = #tpu.core_type<tc>, window_params = [{transform_indices = @transform_0, window_bounds = array<i64: 1>}, {transform_indices = @transform_1, window_bounds = array<i64: 4, 512>}, {transform_indices = @transform_2, window_bounds = array<i64: 4, 512>}]} {
    %c0 = arith.constant 0 : index
    %0 = memref.load %arg1[%c0] : memref<1xf32, #tpu.memory_space<smem>>
    %c0_0 = arith.constant 0 : index
    %c0_1 = arith.constant 0 : index
    %1 = vector.load %arg2[%c0_0, %c0_1] : memref<4x512xf32, #tpu.memory_space<vmem>>, vector<4x512xf32>
    %2 = vector.broadcast %0 : f32 to vector<4x512xf32>
    %3 = arith.mulf %1, %2 : vector<4x512xf32>
    %c0_2 = arith.constant 0 : index
    %c0_3 = arith.constant 0 : index
    %4 = vector.load %arg3[%c0_2, %c0_3] : memref<4x512xf32, #tpu.memory_space<vmem>>, vector<4x512xf32>
    tpu.vector_store %arg3[%c0_2, %c0_3], %3 {strides = array<i32>} : memref<4x512xf32, #tpu.memory_space<vmem>>, vector<4x512xf32>,
    return
  }
  func.func @transform_0(%arg0: i32) -> i32 {
    %c0_i32 = arith.constant 0 : i32
    %c0_i32_0 = arith.constant 0 : i32
    return %c0_i32 : i32
  }
  func.func @transform_1(%arg0: i32) -> (i32, i32) {
    %c0_i32 = arith.constant 0 : i32
    %c0_i32_0 = arith.constant 0 : i32
    return %arg0, %c0_i32 : i32, i32
  }
  func.func @transform_2(%arg0: i32) -> (i32, i32) {
    %c0_i32 = arith.constant 0 : i32
    %c0_i32_0 = arith.constant 0 : i32
    return %arg0, %c0_i32 : i32, i32
  }
}

</mosaic_0001>

<llo_original>
// kernel: tpu_custom_call.1
$region0: #{tpu_custom_call.1}
  #allocation0 [shape = 'u32[]', space=smem, size = 0x4, offset = 0x4, fixed_abs, tag = 'smem constant byte address 0x4 - core index']
  #allocation1 [shape = 'u32[144,128]{1,0:T(1,128)}', space=vmem, size = 0x12000, scoped, tag = 'internal scratch']
  #allocation2 [shape = 'f32[1]{0:T(128)S(6)}', space=smem, size = 0x200, scoped, tag = 'scoped memory for tpu_custom_call.1']
  %s0 = inlined_call_operand.<no memory space> [shape: f32[1], index: 0, kind: input, shape index: {}]
  %s1 = inlined_call_operand.hbm [shape: f32[4,512], index: 1, kind: input, shape index: {}]
  %s2 = inlined_call_operand.hbm [shape: f32[4,512], index: 2, kind: output, shape index: {}]
  %s3 = sld [smem:[#allocation0]]
  $region22: #{tpu_custom_call.1} parent=0
    _
  %s5 = ssub.s32 1, %s3
  %s6 = scalar_select 0, %s5, %s3
  %7 = sst [smem:[#allocation2]] %s0
  $region1: #{tpu_custom_call.1} parent=0
    #allocation3 [shape = 'u8[8192]{0}', space=vmem, size = 0x2000, scoped, tag = 'input window, operand 1, single buffered']
    #allocation4 [shape = 's32[1]{0}', space=sflag, size = 0x4, scoped, tag = 'scoped memory for tpu_custom_call.1']
    #allocation5 [shape = 's32[1]{0}', space=sflag, size = 0x4, scoped, tag = 'scoped memory for tpu_custom_call.1']
    #allocation6 [shape = 'u8[8192]{0}', space=vmem, size = 0x2000, scoped, tag = 'output window, operand 0, single buffered']
    %8 = vsyncpa [#allocation4], 0
    %9 = vsyncpa [#allocation5], 0
    // Predicated region
    $region2: #{tpu_custom_call.1} parent=1 // pred_check
      _
    $region3: #{tpu_custom_call.1} parent=1 // pred_check_branch
      %11 = sbr.rel (0) target = $region5
    $region4: #{tpu_custom_call.1} parent=1 // pred_region
      _
    $region5: #{tpu_custom_call.1} parent=1 // pred_fallthru
      _
    // Predicated region
    $region6: #{tpu_custom_call.1} parent=1 // pred_check
      _
    $region7: #{tpu_custom_call.1} parent=1 // pred_check_branch
      %13 = sbr.rel (0) target = $region9
    $region8: #{tpu_custom_call.1} parent=1 // pred_region
      %s15 = ssub.s32 256, 256
      %16 = vsyncadd [#allocation4], %s15
      %s18 = sshll.u32 [#allocation3], 4
      %s19 = int_to_ptr.vmem [resolvable:$true] %s18
      %21 = dma.hbm_to_vmem [thread:$0]  %s1, 256, %s19, [#allocation4]
    $region9: #{tpu_custom_call.1} parent=1 // pred_fallthru
      _
    // Predicated region
    $region10: #{tpu_custom_call.1} parent=1 // pred_check
      _
    $region11: #{tpu_custom_call.1} parent=1 // pred_check_branch
      %23 = sbr.rel (0) target = $region13
    $region12: #{tpu_custom_call.1} parent=1 // pred_region
      %24 = dma.done [#allocation4], 256
    $region13: #{tpu_custom_call.1} parent=1 // pred_fallthru
      _
    %s25 = sld [smem:[#allocation2]]
    %v26 = vld [vmem:[#allocation3] sm:$0xff]
    %v27 = vld [vmem:[#allocation3 + $0x8] sm:$0xff]
    %v28 = vstv %s25
    %v29 = vmul.f32 %v26, %v28
    %v30 = vmul.f32 %v27, %v28
    %31 = vst [vmem:[#allocation6] sm:$0xff] %v29
    %32 = vst [vmem:[#allocation6 + $0x8] sm:$0xff] %v30
    // Predicated region
    $region14: #{tpu_custom_call.1} parent=1 // pred_check
      _
    $region15: #{tpu_custom_call.1} parent=1 // pred_check_branch
      %34 = sbr.rel (0) target = $region17
    $region16: #{tpu_custom_call.1} parent=1 // pred_region
      %s36 = ssub.s32 256, 256
      %37 = vsyncadd [#allocation5], %s36
      %s39 = sshll.u32 [#allocation6], 4
      %s40 = int_to_ptr.vmem [resolvable:$true] %s39
      %42 = dma.vmem_to_hbm [thread:$0]  %s40, 256, %s2, [#allocation5]
    $region17: #{tpu_custom_call.1} parent=1 // pred_fallthru
      _
    // Predicated region
    $region18: #{tpu_custom_call.1} parent=1 // pred_check
      _
    $region19: #{tpu_custom_call.1} parent=1 // pred_check_branch
      %44 = sbr.rel (0) target = $region21
    $region20: #{tpu_custom_call.1} parent=1 // pred_region
      %45 = dma.done [#allocation5], 256
    $region21: #{tpu_custom_call.1} parent=1 // pred_fallthru
      _
    %46 = vsyncpa [#allocation4], 1
    %47 = vsyncpa [#allocation5], 1

</llo_original>
